<compile_context>
chip_gen: v5e
topology: v5e:2x2
jax: 0.10.0
libtpu: 0.0.40
codegen_flags: <defaults>
</compile_context>

<pallas_src>
import functools
import numpy as np
import jax
import jax.numpy as jnp
from jax.experimental import pallas as pl
from jax.experimental.pallas import tpu as pltpu


# -------------------------- Pallas kernel --------------------------
def _convt_leaky_kernel(x_ref, w_ref, m_ref, b_ref, o_ref, *, cout, n_taps, neg_slope):
    # x_ref: (1, Cin, HW)   nearest-upsampled input, lane-dense along flattened H_out*W_out
    # w_ref: (K*Cout, Cin)  block-diagonal grouped weight, one Cout-row block per tap
    # m_ref: (K, 1, HW)     static 0/1 phase mask of each tap over the flattened output
    # b_ref: (Cout, 1)      bias
    # o_ref: (1, Cout, HW)
    # One small MXU matmul computes all taps at output resolution; contraction = Cin (8).
    y = jnp.dot(w_ref[...], x_ref[0], preferred_element_type=jnp.float32)   # (K*Cout, HW)
    # Per-position tap selection: masks are exact 0/1, so multiply-add is exact and cheap
    # (no in-kernel gathers, int div/mod, or strided scatters).
    v = m_ref[0] * y[:cout, :]
    for k in range(1, n_taps):
        v = v + m_ref[k] * y[k * cout:(k + 1) * cout, :]
    v = v + b_ref[...]
    # where(v > 0, v, v * 1.202)
    o_ref[0] = jnp.where(v > 0, v, v * neg_slope)


# -------------------------- wrapper --------------------------
def conv_transpose_leaky(x_nchw, W, b, *, stride, pad, groups):
    """ConvTranspose2d(stride, pad, groups, bias) + where(v>0, v, 1.202*v).

    x_nchw : (N, Cin, H, W)                float32
    W      : (Cin, Cout//groups, KH, KW)   PyTorch ConvTranspose2d weight layout
    b      : (Cout,)
    returns: (N, Cout, H_out, W_out)
    """
    N, Cin, H, Wd = x_nchw.shape
    Cog, KH, KW = W.shape[1], W.shape[2], W.shape[3]
    Cout = Cog * groups
    Cig = Cin // groups
    H_out = (H - 1) * stride - 2 * pad + KH
    W_out = (Wd - 1) * stride - 2 * pad + KW
    HW = H_out * W_out
    K = KH * KW

    # kernel < stride  =>  each output position receives at most one tap.
    assert KH <= stride and KW <= stride

    # For a phase-valid output row oh (tap kh = (oh+pad) % stride), the source row is
    #   ih = (oh + pad)//stride = oh//stride + i0   with i0 identical for every tap.
    i0s = {(((kh - pad) % stride) + pad) // stride for kh in range(KH)}
    j0s = {(((kw - pad) % stride) + pad) // stride for kw in range(KW)}
    assert len(i0s) == 1 and len(j0s) == 1
    i0, j0 = i0s.pop(), j0s.pop()
    nb_h = -(-H_out // stride)          # 13
    nb_w = -(-W_out // stride)          # 13
    # every source row/col needed is in-bounds for this configuration
    assert 0 <= i0 and i0 + nb_h <= H and 0 <= j0 and j0 + nb_w <= Wd

    x = x_nchw.astype(jnp.float32)
    # Nearest-neighbour upsample of the valid input window: broadcast + reshape + slice only
    # (no gather HLOs, no redundant GT in HBM).  x_up[n,c,oh,ow] = x[n,c,oh//s+i0,ow//s+j0].
    xv = x[:, :, i0:i0 + nb_h, j0:j0 + nb_w]                             # (N, Cin, 13, 13)
    x_up = jnp.broadcast_to(xv[:, :, :, None, :, None],
                            (N, Cin, nb_h, stride, nb_w, stride))
    x_up = x_up.reshape(N, Cin, nb_h * stride, nb_w * stride)[:, :, :H_out, :W_out]
    x_up = x_up.reshape(N, Cin, HW)                                      # ~88 KB total

    # grouped weight -> dense block-diagonal, one Cout-row block per tap: (K*Cout, Cin)
    Wg = W.astype(jnp.float32).reshape(groups, Cig, Cog, KH, KW)
    eye = jnp.eye(groups, dtype=jnp.float32)
    Wbd = Wg[:, :, None, :, :, :] * eye[:, None, :, None, None, None]   # (gi,Cig,go,Cog,KH,KW)
    W_all = jnp.transpose(Wbd, (4, 5, 2, 3, 0, 1)).reshape(K * Cout, Cin)

    # static per-tap 0/1 phase masks over the flattened output (pure numpy constants)
    rph = (np.arange(H_out) + pad) % stride
    cph = (np.arange(W_out) + pad) % stride
    masks_np = np.zeros((K, 1, HW), np.float32)
    for kh in range(KH):
        for kw in range(KW):
            m2d = (rph[:, None] == kh) & (cph[None, :] == kw)
            masks_np[kh * KW + kw, 0] = m2d.reshape(-1).astype(np.float32)
    masks = jnp.asarray(masks_np)

    b2 = b.astype(jnp.float32).reshape(Cout, 1)

    kernel = functools.partial(_convt_leaky_kernel, cout=Cout, n_taps=K, neg_slope=1.202)

    out = pl.pallas_call(
        kernel,
        out_shape=jax.ShapeDtypeStruct((N, Cout, HW), jnp.float32),
        grid=(N,),
        in_specs=[
            pl.BlockSpec((1, Cin, HW), lambda n: (n, 0, 0)),
            pl.BlockSpec((K * Cout, Cin), lambda n: (0, 0)),
            pl.BlockSpec((K, 1, HW), lambda n: (0, 0, 0)),
            pl.BlockSpec((Cout, 1), lambda n: (0, 0)),
        ],
        out_specs=pl.BlockSpec((1, Cout, HW), lambda n: (n, 0, 0)),
        compiler_params=pltpu.CompilerParams(dimension_semantics=("parallel",)),
        cost_estimate=pl.CostEstimate(
            flops=2 * N * (K * Cout) * Cin * HW,
            transcendentals=0,
            bytes_accessed=4 * (N * Cin * HW + K * Cout * Cin + K * HW + Cout + N * Cout * HW),
        ),
    )(x_up, W_all, masks, b2)

    # output is already (N, Cout, H_out*W_out): a reshape gives NCHW (no transpose / slice)
    return out.reshape(N, Cout, H_out, W_out)


# -------------------------- numpy reference --------------------------
def _ref(x, W, b, stride, pad, groups):
    x, W, b = np.asarray(x), np.asarray(W), np.asarray(b)
    N, Cin, H, Wd = x.shape
    Cog, KH, KW = W.shape[1], W.shape[2], W.shape[3]
    Cig = Cin // groups
    Cout = Cog * groups
    H_out = (H - 1) * stride - 2 * pad + KH
    W_out = (Wd - 1) * stride - 2 * pad + KW
    out = np.zeros((N, Cout, H_out, W_out), np.float32)
    for grp in range(groups):
        xg = x[:, grp * Cig:(grp + 1) * Cig]          # (N, Cig, H, W)
        wg = W[grp * Cig:(grp + 1) * Cig]             # (Cig, Cog, KH, KW)
        for ih in range(H):
            for iw in range(Wd):
                for kh in range(KH):
                    for kw in range(KW):
                        oh = ih * stride + kh - pad
                        ow = iw * stride + kw - pad
                        if 0 <= oh < H_out and 0 <= ow < W_out:
                            out[:, grp * Cog:(grp + 1) * Cog, oh, ow] += \
                                np.einsum('nc,cd->nd', xg[:, :, ih, iw], wg[:, :, kh, kw])
    v1 = out + b[None, :, None, None]
    return np.where(v1 > 0, v1, v1 * 1.202)


# -------------------------- main --------------------------
if __name__ == "__main__":
    # small shapes consistent with the module's forward
    N, Cin, H, Wd = 2, 8, 16, 16
    groups, Cout = 4, 16
    KH = KW = 2
    stride, pad = 3, 5

    key = jax.random.PRNGKey(0)
    kx, kw_, kb = jax.random.split(key, 3)
    x = jax.random.normal(kx, (N, Cin, H, Wd), jnp.float32)
    # ConvTranspose2d weight layout: (in_channels, out_channels // groups, KH, KW)
    W = jax.random.normal(kw_, (Cin, Cout // groups, KH, KW), jnp.float32) * 0.2
    b = jax.random.normal(kb, (Cout,), jnp.float32) * 0.1

    fn = jax.jit(functools.partial(conv_transpose_leaky,
                                   stride=stride, pad=pad, groups=groups))
    out = jax.block_until_ready(fn(x, W, b))

    ref = _ref(x, W, b, stride, pad, groups)
    assert out.shape == ref.shape, (out.shape, ref.shape)
    np.testing.assert_allclose(np.asarray(out), ref, rtol=1e-4, atol=1e-4)

    print("KERNEL_OK")
</pallas_src>

<mosaic_0001>
module attributes {stable_mosaic.version = 11 : i64} {
  func.func @_convt_leaky_kernel(%arg0: i32, %arg1: memref<1x8x1369xf32, #tpu.memory_space<vmem>>, %arg2: memref<64x8xf32, #tpu.memory_space<vmem>>, %arg3: memref<4x1x1369xf32, #tpu.memory_space<vmem>>, %arg4: memref<16x1xf32, #tpu.memory_space<vmem>>, %arg5: memref<1x16x1369xf32, #tpu.memory_space<vmem>>) attributes {dimension_semantics = [#tpu.dimension_semantics<parallel>], iteration_bounds = array<i64: 2>, scalar_prefetch = 0 : i64, scratch_operands = 0 : i64, tpu.core_type = #tpu.core_type<tc>, window_params = [{transform_indices = @transform_0, window_bounds = array<i64: 1, 8, 1369>}, {pipeline_mode = #tpu.pipeline_mode<synchronous>, transform_indices = @transform_1, window_bounds = array<i64: 64, 8>}, {pipeline_mode = #tpu.pipeline_mode<synchronous>, transform_indices = @transform_2, window_bounds = array<i64: 4, 1, 1369>}, {pipeline_mode = #tpu.pipeline_mode<synchronous>, transform_indices = @transform_3, window_bounds = array<i64: 16, 1>}, {transform_indices = @transform_4, window_bounds = array<i64: 1, 16, 1369>}]} {
    %c0 = arith.constant 0 : index
    %c0_0 = arith.constant 0 : index
    %0 = vector.load %arg2[%c0, %c0_0] : memref<64x8xf32, #tpu.memory_space<vmem>>, vector<64x8xf32>
    %c0_1 = arith.constant 0 : index
    %c0_2 = arith.constant 0 : index
    %c0_3 = arith.constant 0 : index
    %1 = vector.load %arg1[%c0_1, %c0_2, %c0_3] : memref<1x8x1369xf32, #tpu.memory_space<vmem>>, vector<1x8x1369xf32>
    %2 = vector.shape_cast %1 : vector<1x8x1369xf32> to vector<8x1369xf32>
    %cst = arith.constant dense<0.000000e+00> : vector<64x1369xf32>
    %3 = tpu.matmul %0, %2, %cst {dimension_numbers = #tpu.dot_dimension_numbers<[1], [0], [0], [1], [0, 0, 1, 1], [], []>} : vector<64x8xf32>, vector<8x1369xf32>, vector<64x1369xf32> -> vector<64x1369xf32>
    %c0_4 = arith.constant 0 : index
    %c0_5 = arith.constant 0 : index
    %c0_6 = arith.constant 0 : index
    %4 = vector.load %arg3[%c0_4, %c0_5, %c0_6] : memref<4x1x1369xf32, #tpu.memory_space<vmem>>, vector<1x1x1369xf32>
    %5 = vector.shape_cast %4 : vector<1x1x1369xf32> to vector<1x1369xf32>
    %6 = vector.extract_strided_slice %3 {offsets = [0, 0], sizes = [16, 1369], strides = [1, 1]} : vector<64x1369xf32> to vector<16x1369xf32>
    %7 = vector.broadcast %5 : vector<1x1369xf32> to vector<16x1369xf32>
    %8 = arith.mulf %7, %6 : vector<16x1369xf32>
    %c1 = arith.constant 1 : index
    %c0_7 = arith.constant 0 : index
    %c0_8 = arith.constant 0 : index
    %9 = vector.load %arg3[%c1, %c0_7, %c0_8] : memref<4x1x1369xf32, #tpu.memory_space<vmem>>, vector<1x1x1369xf32>
    %10 = vector.shape_cast %9 : vector<1x1x1369xf32> to vector<1x1369xf32>
    %11 = vector.extract_strided_slice %3 {offsets = [16, 0], sizes = [16, 1369], strides = [1, 1]} : vector<64x1369xf32> to vector<16x1369xf32>
    %12 = vector.broadcast %10 : vector<1x1369xf32> to vector<16x1369xf32>
    %13 = arith.mulf %12, %11 : vector<16x1369xf32>
    %14 = arith.addf %8, %13 : vector<16x1369xf32>
    %c2 = arith.constant 2 : index
    %c0_9 = arith.constant 0 : index
    %c0_10 = arith.constant 0 : index
    %15 = vector.load %arg3[%c2, %c0_9, %c0_10] : memref<4x1x1369xf32, #tpu.memory_space<vmem>>, vector<1x1x1369xf32>
    %16 = vector.shape_cast %15 : vector<1x1x1369xf32> to vector<1x1369xf32>
    %17 = vector.extract_strided_slice %3 {offsets = [32, 0], sizes = [16, 1369], strides = [1, 1]} : vector<64x1369xf32> to vector<16x1369xf32>
    %18 = vector.broadcast %16 : vector<1x1369xf32> to vector<16x1369xf32>
    %19 = arith.mulf %18, %17 : vector<16x1369xf32>
    %20 = arith.addf %14, %19 : vector<16x1369xf32>
    %c3 = arith.constant 3 : index
    %c0_11 = arith.constant 0 : index
    %c0_12 = arith.constant 0 : index
    %21 = vector.load %arg3[%c3, %c0_11, %c0_12] : memref<4x1x1369xf32, #tpu.memory_space<vmem>>, vector<1x1x1369xf32>
    %22 = vector.shape_cast %21 : vector<1x1x1369xf32> to vector<1x1369xf32>
    %23 = vector.extract_strided_slice %3 {offsets = [48, 0], sizes = [16, 1369], strides = [1, 1]} : vector<64x1369xf32> to vector<16x1369xf32>
    %24 = vector.broadcast %22 : vector<1x1369xf32> to vector<16x1369xf32>
    %25 = arith.mulf %24, %23 : vector<16x1369xf32>
    %26 = arith.addf %20, %25 : vector<16x1369xf32>
    %c0_13 = arith.constant 0 : index
    %c0_14 = arith.constant 0 : index
    %27 = vector.load %arg4[%c0_13, %c0_14] : memref<16x1xf32, #tpu.memory_space<vmem>>, vector<16x1xf32>
    %28 = vector.broadcast %27 : vector<16x1xf32> to vector<16x1369xf32>
    %29 = arith.addf %26, %28 : vector<16x1369xf32>
    %cst_15 = arith.constant 0.000000e+00 : f32
    %30 = vector.broadcast %cst_15 : f32 to vector<16x1369xf32>
    %31 = arith.cmpf ogt, %29, %30 : vector<16x1369xf32>
    %cst_16 = arith.constant 1.202000e+00 : f32
    %32 = vector.broadcast %cst_16 : f32 to vector<16x1369xf32>
    %33 = arith.mulf %29, %32 : vector<16x1369xf32>
    %34 = arith.select %31, %29, %33 : vector<16x1369xi1>, vector<16x1369xf32>
    %c0_17 = arith.constant 0 : index
    %c0_18 = arith.constant 0 : index
    %c0_19 = arith.constant 0 : index
    %35 = vector.load %arg5[%c0_17, %c0_18, %c0_19] : memref<1x16x1369xf32, #tpu.memory_space<vmem>>, vector<1x16x1369xf32>
    %36 = vector.shape_cast %35 : vector<1x16x1369xf32> to vector<16x1369xf32>
    %37 = vector.shape_cast %34 : vector<16x1369xf32> to vector<1x16x1369xf32>
    tpu.vector_store %arg5[%c0_17, %c0_18, %c0_19], %37 {strides = array<i32>} : memref<1x16x1369xf32, #tpu.memory_space<vmem>>, vector<1x16x1369xf32>,
    return
  }
  func.func @transform_0(%arg0: i32) -> (i32, i32, i32) {
    %c0_i32 = arith.constant 0 : i32
    %c0_i32_0 = arith.constant 0 : i32
    %c0_i32_1 = arith.constant 0 : i32
    return %arg0, %c0_i32, %c0_i32_0 : i32, i32, i32
  }
  func.func @transform_1(%arg0: i32) -> (i32, i32) {
    %c0_i32 = arith.constant 0 : i32
    %c0_i32_0 = arith.constant 0 : i32
    %c0_i32_1 = arith.constant 0 : i32
    return %c0_i32, %c0_i32_0 : i32, i32
  }
  func.func @transform_2(%arg0: i32) -> (i32, i32, i32) {
    %c0_i32 = arith.constant 0 : i32
    %c0_i32_0 = arith.constant 0 : i32
    %c0_i32_1 = arith.constant 0 : i32
    %c0_i32_2 = arith.constant 0 : i32
    return %c0_i32, %c0_i32_0, %c0_i32_1 : i32, i32, i32
  }
  func.func @transform_3(%arg0: i32) -> (i32, i32) {
    %c0_i32 = arith.constant 0 : i32
    %c0_i32_0 = arith.constant 0 : i32
    %c0_i32_1 = arith.constant 0 : i32
    return %c0_i32, %c0_i32_0 : i32, i32
  }
  func.func @transform_4(%arg0: i32) -> (i32, i32, i32) {
    %c0_i32 = arith.constant 0 : i32
    %c0_i32_0 = arith.constant 0 : i32
    %c0_i32_1 = arith.constant 0 : i32
    return %arg0, %c0_i32, %c0_i32_0 : i32, i32, i32
  }
}

</mosaic_0001>

<llo_original>
// kernel: conv_transpose_leaky.1
$region0: #{conv_transpose_leaky.1}
  #allocation0 [shape = 'u32[]', space=smem, size = 0x4, offset = 0x4, fixed_abs, tag = 'smem constant byte address 0x4 - core index']
  #allocation1 [shape = 'u32[72,128]{1,0:T(1,128)}', space=vmem, size = 0x9000, scoped, tag = 'internal scratch']
  %s0 = inlined_call_operand.vmem [shape: f32[2,8,1369], index: 0, kind: input, shape index: {}]
  %s1 = inlined_call_operand.vmem [shape: f32[64,8], index: 1, kind: input, shape index: {}]
  %s2 = inlined_call_operand.vmem [shape: f32[4,1,1369], index: 2, kind: input, shape index: {}]
  %s3 = inlined_call_operand.vmem [shape: f32[16,1], index: 3, kind: input, shape index: {}]
  %s4 = inlined_call_operand.vmem [shape: f32[2,16,1369], index: 4, kind: output, shape index: {}]
  %s5 = sld [smem:[#allocation0]]
  $region49: #{conv_transpose_leaky.1} parent=0
    _
  %s7 = ssub.s32 1, %s5
  %s8 = scalar_select 0, %s7, %s5
  loop: start=0, step=1, limit=4
  $region2: #{conv_transpose_leaky.1} parent=0 // loop_pre_header
    _
  $region3: #{conv_transpose_leaky.1} parent=0 // loop_header
    %s10 = sphi 0, %s14
    %p11 = scmp.ge.s32.totalorder %s10, 4
    %s20 = sphi 0, %s22
    %s23 = sphi 0, %s20
    %s24 = sphi 0, %s23
    %s40 = sphi 0, %s24
    %s44 = sphi 0, %s44
    %s46 = sphi 0, %s44
    %s47 = sphi 0, %s46
    %s61 = sphi 0, %s47
    %s65 = sphi 0, %s65
    %s67 = sphi 0, %s65
    %s68 = sphi 0, %s67
    %s82 = sphi 0, %s68
    %s86 = sphi 0, %s86
    %s88 = sphi 0, %s86
    %s89 = sphi 0, %s88
    %s103 = sphi 0, %s89
    %s109 = sphi 0, %s111
    %s112 = sphi 0, %s109
    %s113 = sphi 0, %s112
    %s129 = sphi 0, %s113
  $region4: #{conv_transpose_leaky.1} parent=0 // loop_header_branch
    %13 = sbr.rel (%p11) target = $region8
  $region5: #{conv_transpose_leaky.1} parent=0 // loop_body
    %s15 = ssub.s32 %s10, 1
    %s16 = ssub.s32 %s10, 2
    %s17 = sadd.s32 %s10, 1
    %s18 = ssub.s32 %s10, %s17
    %p19 = scmp.eq.s32.totalorder %s18, 0
    %s21 = sadd.s32 %s20, 1
    %s22 = scalar_select %p19, %s20, %s21
    %p25 = pneg %p19
    %p26 = scmp.eq.s32.totalorder %s10, 1
    %p27 = por %p25, %p26
    %p28 = scmp.ne.s32.totalorder %s20, %s23
    %p29 = scmp.eq.s32.totalorder %s10, 0
    %p30 = por %p28, %p29
    %p31 = scmp.ne.s32.totalorder %s20, %s23
    %p32 = scmp.eq.s32.totalorder %s15, 1
    %p33 = por %p31, %p32
    %p34 = scmp.ne.s32.totalorder %s23, %s24
    %p35 = scmp.eq.s32.totalorder %s15, 0
    %p36 = por %p34, %p35
    %p37 = scmp.ne.s32.totalorder %s23, %s24
    %p38 = scmp.eq.s32.totalorder %s16, 1
    %p39 = por %p37, %p38
    %p41 = scmp.ne.s32.totalorder %s24, %s40
    %p42 = scmp.eq.s32.totalorder %s16, 0
    %p43 = por %p41, %p42
    %s45 = sadd.s32 %s44, 1
    %p48 = scmp.eq.s32.totalorder %s10, 1
    %p49 = scmp.ne.s32.totalorder %s44, %s46
    %p50 = scmp.eq.s32.totalorder %s10, 0
    %p51 = por %p49, %p50
    %p52 = scmp.ne.s32.totalorder %s44, %s46
    %p53 = scmp.eq.s32.totalorder %s15, 1
    %p54 = por %p52, %p53
    %p55 = scmp.ne.s32.totalorder %s46, %s47
    %p56 = scmp.eq.s32.totalorder %s15, 0
    %p57 = por %p55, %p56
    %p58 = scmp.ne.s32.totalorder %s46, %s47
    %p59 = scmp.eq.s32.totalorder %s16, 1
    %p60 = por %p58, %p59
    %p62 = scmp.ne.s32.totalorder %s47, %s61
    %p63 = scmp.eq.s32.totalorder %s16, 0
    %p64 = por %p62, %p63
    %s66 = sadd.s32 %s65, 1
    %p69 = scmp.eq.s32.totalorder %s10, 1
    %p70 = scmp.ne.s32.totalorder %s65, %s67
    %p71 = scmp.eq.s32.totalorder %s10, 0
    %p72 = por %p70, %p71
    %p73 = scmp.ne.s32.totalorder %s65, %s67
    %p74 = scmp.eq.s32.totalorder %s15, 1
    %p75 = por %p73, %p74
    %p76 = scmp.ne.s32.totalorder %s67, %s68
    %p77 = scmp.eq.s32.totalorder %s15, 0
    %p78 = por %p76, %p77
    %p79 = scmp.ne.s32.totalorder %s67, %s68
    %p80 = scmp.eq.s32.totalorder %s16, 1
    %p81 = por %p79, %p80
    %p83 = scmp.ne.s32.totalorder %s68, %s82
    %p84 = scmp.eq.s32.totalorder %s16, 0
    %p85 = por %p83, %p84
    %s87 = sadd.s32 %s86, 1
    %p90 = scmp.eq.s32.totalorder %s10, 1
    %p91 = scmp.ne.s32.totalorder %s86, %s88
    %p92 = scmp.eq.s32.totalorder %s10, 0
    %p93 = por %p91, %p92
    %p94 = scmp.ne.s32.totalorder %s86, %s88
    %p95 = scmp.eq.s32.totalorder %s15, 1
    %p96 = por %p94, %p95
    %p97 = scmp.ne.s32.totalorder %s88, %s89
    %p98 = scmp.eq.s32.totalorder %s15, 0
    %p99 = por %p97, %p98
    %p100 = scmp.ne.s32.totalorder %s88, %s89
    %p101 = scmp.eq.s32.totalorder %s16, 1
    %p102 = por %p100, %p101
    %p104 = scmp.ne.s32.totalorder %s89, %s103
    %p105 = scmp.eq.s32.totalorder %s16, 0
    %p106 = por %p104, %p105
    %s107 = ssub.s32 %s10, %s17
    %p108 = scmp.eq.s32.totalorder %s107, 0
    %s110 = sadd.s32 %s109, 1
    %s111 = scalar_select %p108, %s109, %s110
    %p114 = pneg %p108
    %p115 = scmp.eq.s32.totalorder %s10, 1
    %p116 = por %p114, %p115
    %p117 = scmp.ne.s32.totalorder %s109, %s112
    %p118 = scmp.eq.s32.totalorder %s10, 0
    %p119 = por %p117, %p118
    %p120 = scmp.ne.s32.totalorder %s109, %s112
    %p121 = scmp.eq.s32.totalorder %s15, 1
    %p122 = por %p120, %p121
    %p123 = scmp.ne.s32.totalorder %s112, %s113
    %p124 = scmp.eq.s32.totalorder %s15, 0
    %p125 = por %p123, %p124
    %p126 = scmp.ne.s32.totalorder %s112, %s113
    %p127 = scmp.eq.s32.totalorder %s16, 1
    %p128 = por %p126, %p127
    %p130 = scmp.ne.s32.totalorder %s113, %s129
    %p131 = scmp.eq.s32.totalorder %s16, 0
    %p132 = por %p130, %p131
    %p133 = scmp.le.s32.totalorder 1, %s10
    %p134 = scmp.lt.s32.totalorder %s10, 3
    %p135 = pnand %p133, %p134
    %p136 = pneg %p135
    // Predicated region
    $region9: #{conv_transpose_leaky.1} parent=5 // pred_check
      _
    $region10: #{conv_transpose_leaky.1} parent=5 // pred_check_branch
      %138 = sbr.rel (%p135) target = $region12
    $region11: #{conv_transpose_leaky.1} parent=5 // pred_region
      %s139 = ssub.s32 %s10, 1
      // Predicated region
      $region13: #{conv_transpose_leaky.1} parent=11 // pred_check
        %p140 = pneg %p57
      $region14: #{conv_transpose_leaky.1} parent=11 // pred_check_branch
        %142 = sbr.rel (%p140) target = $region16
      $region15: #{conv_transpose_leaky.1} parent=11 // pred_region
        _
      $region16: #{conv_transpose_leaky.1} parent=11 // pred_fallthru
        _
      // Predicated region
      $region17: #{conv_transpose_leaky.1} parent=11 // pred_check
        %p143 = pneg %p78
      $region18: #{conv_transpose_leaky.1} parent=11 // pred_check_branch
        %145 = sbr.rel (%p143) target = $region20
      $region19: #{conv_transpose_leaky.1} parent=11 // pred_region
        _
      $region20: #{conv_transpose_leaky.1} parent=11 // pred_fallthru
        _
      // Predicated region
      $region21: #{conv_transpose_leaky.1} parent=11 // pred_check
        %p146 = pneg %p99
      $region22: #{conv_transpose_leaky.1} parent=11 // pred_check_branch
        %148 = sbr.rel (%p146) target = $region24
      $region23: #{conv_transpose_leaky.1} parent=11 // pred_region
        _
      $region24: #{conv_transpose_leaky.1} parent=11 // pred_fallthru
        _
    $region12: #{conv_transpose_leaky.1} parent=5 // pred_fallthru
      _
    %p149 = scmp.lt.s32.totalorder %s10, 2
    // Predicated region
    $region25: #{conv_transpose_leaky.1} parent=5 // pred_check
      %p150 = pneg %p149
    $region26: #{conv_transpose_leaky.1} parent=5 // pred_check_branch
      %152 = sbr.rel (%p150) target = $region28
    $region27: #{conv_transpose_leaky.1} parent=5 // pred_region
      // Predicated region
      $region29: #{conv_transpose_leaky.1} parent=27 // pred_check
        %p153 = pneg %p30
      $region30: #{conv_transpose_leaky.1} parent=27 // pred_check_branch
        %155 = sbr.rel (%p153) target = $region32
      $region31: #{conv_transpose_leaky.1} parent=27 // pred_region
        %p156 = scmp.lt.s32.totalorder %s10, 1
        %s157 = scalar_select %p156, %s10, 1
        %s158 = smul.addr %s157, 11
        %s159 = smul.addr %s158, 8
        %s160 = scalar_lea.vmem %s0, %s159
      $region32: #{conv_transpose_leaky.1} parent=27 // pred_fallthru
        _
    $region28: #{conv_transpose_leaky.1} parent=5 // pred_fallthru
      _
    %p161 = scmp.le.s32.totalorder 1, %s10
    %p162 = scmp.lt.s32.totalorder %s10, 3
    %p163 = pnand %p161, %p162
    %p164 = pneg %p163
    // Predicated region
    $region33: #{conv_transpose_leaky.1} parent=5 // pred_check
      _
    $region34: #{conv_transpose_leaky.1} parent=5 // pred_check_branch
      %166 = sbr.rel (%p163) target = $region36
    $region35: #{conv_transpose_leaky.1} parent=5 // pred_region
      %s167 = ssub.s32 %s10, 1
      %p168 = scmp.lt.s32.totalorder %s15, 1
      %s169 = scalar_select %p168, %s15, 1
      %s170 = smul.addr %s169, 11
      %s171 = smul.addr %s170, 8
      %s172 = scalar_lea.vmem %s0, %s171
      %p173 = pneg %p36
      %p174 = pneg %p33
      %p175 = pneg %p57
      %p176 = pneg %p54
      %p177 = pneg %p78
      %p178 = pneg %p75
      %p179 = pneg %p99
      %p180 = pneg %p96
      %p181 = pneg %p125
      %p182 = pneg %p122
      %p183 = scmp.lt.s32.totalorder %s15, 1
      %s184 = scalar_select %p183, %s15, 1
      %s185 = smul.addr %s184, 22
      %s186 = smul.addr %s185, 8
      %s187 = scalar_lea.vmem %s4, %s186
      %p188 = scmp.lt.s32.totalorder %s15, 1
      %s189 = scalar_select %p188, %s15, 1
      %s190 = smul.addr %s189, 11
      %s191 = smul.addr %s190, 8
      %s192 = scalar_lea.vmem %s0, %s191
      %p193 = scmp.lt.s32.totalorder %s15, 1
      %s194 = scalar_select %p193, %s15, 1
      %s195 = smul.addr %s194, 22
      %s196 = smul.addr %s195, 8
      %s197 = scalar_lea.vmem %s4, %s196
      %v198 = vld [vmem:[%s1] sm:$0xff]
      %v199 = vld [vmem:[%s1 + $0x8] sm:$0xff]
      %v200 = vld [vmem:[%s1 + $0x10] sm:$0xff]
      %v201 = vld [vmem:[%s1 + $0x18] sm:$0xff]
      %v202 = vld [vmem:[%s1 + $0x20] sm:$0xff]
      %v203 = vld [vmem:[%s1 + $0x28] sm:$0xff]
      %v204 = vld [vmem:[%s1 + $0x30] sm:$0xff]
      %v205 = vld [vmem:[%s1 + $0x38] sm:$0xff]
      %v206 = vld [vmem:[%s192] sm:$0xff]
      %v207 = vld [vmem:[%s192 + $0x8] sm:$0xff]
      %v208 = vld [vmem:[%s192 + $0x10] sm:$0xff]
      %v209 = vld [vmem:[%s192 + $0x18] sm:$0xff]
      %v210 = vld [vmem:[%s192 + $0x20] sm:$0xff]
      %v211 = vld [vmem:[%s192 + $0x28] sm:$0xff]
      %v212 = vld [vmem:[%s192 + $0x30] sm:$0xff]
      %v213 = vld [vmem:[%s192 + $0x38] sm:$0xff]
      %v214 = vld [vmem:[%s192 + $0x40] sm:$0xff]
      %v215 = vld [vmem:[%s192 + $0x48] sm:$0xff]
      %v216 = vld [vmem:[%s192 + $0x50] sm:$0xff]
      %vm217 = vcmask 64512
      %v219 = vsel %vm217, %v198, 0
      %v222 = vsel %vm217, %v199, 0
      %v225 = vsel %vm217, %v200, 0
      %v228 = vsel %vm217, %v201, 0
      %v231 = vsel %vm217, %v202, 0
      %v234 = vsel %vm217, %v203, 0
      %v237 = vsel %vm217, %v204, 0
      %v240 = vsel %vm217, %v205, 0
      %242 = vmatpush.msra.mxu0 0.0
      %243 = vmatpush.msra.mxu0 0.0
      %244 = vmatpush.msra.mxu0 0.0
      %245 = vmatpush.msra.mxu0 0.0
      %246 = vmatpush.msra.mxu0 0.0
      %247 = vmatpush.msra.mxu0 0.0
      %248 = vmatpush.msra.mxu0 0.0
      %249 = vmatpush.msra.mxu0 0.0
      %250 = vmatpush.msra.mxu0 0.0
      %251 = vmatpush.msra.mxu0 0.0
      %252 = vmatpush.msra.mxu0 0.0
      %253 = vmatpush.msra.mxu0 0.0
      %254 = vmatpush.msra.mxu0 0.0
      %255 = vmatpush.msra.mxu0 0.0
      %256 = vmatpush.msra.mxu0 0.0
      %257 = vmatpush.msra.mxu0 %v206
      %258 = vmatmul.f32.gmra.mxu0 %v219
      %v259 = vpop.f32.mrf.mxu0
      %v260 = vadd.f32 0.0, %v259
      %261 = vmatmul.f32.gmra.mxu0 %v222
      %v262 = vpop.f32.mrf.mxu0
      %v263 = vadd.f32 0.0, %v262
      %264 = vmatmul.f32.gmra.mxu0 %v225
      %v265 = vpop.f32.mrf.mxu0
      %v266 = vadd.f32 0.0, %v265
      %267 = vmatmul.f32.gmra.mxu0 %v228
      %v268 = vpop.f32.mrf.mxu0
      %v269 = vadd.f32 0.0, %v268
      %270 = vmatmul.f32.gmra.mxu0 %v231
      %v271 = vpop.f32.mrf.mxu0
      %v272 = vadd.f32 0.0, %v271
      %273 = vmatmul.f32.gmra.mxu0 %v234
      %v274 = vpop.f32.mrf.mxu0
      %v275 = vadd.f32 0.0, %v274
      %276 = vmatmul.f32.gmra.mxu0 %v237
      %v277 = vpop.f32.mrf.mxu0
      %v278 = vadd.f32 0.0, %v277
      %279 = vmatmul.f32.gmra.mxu0 %v240
      %v280 = vpop.f32.mrf.mxu0
      %v281 = vadd.f32 0.0, %v280
      %282 = vdwg.mxu0
      %283 = vmatpush.msra.mxu0 0.0
      %284 = vmatpush.msra.mxu0 0.0
      %285 = vmatpush.msra.mxu0 0.0
      %286 = vmatpush.msra.mxu0 0.0
      %287 = vmatpush.msra.mxu0 0.0
      %288 = vmatpush.msra.mxu0 0.0
      %289 = vmatpush.msra.mxu0 0.0
      %290 = vmatpush.msra.mxu0 0.0
      %291 = vmatpush.msra.mxu0 0.0
      %292 = vmatpush.msra.mxu0 0.0
      %293 = vmatpush.msra.mxu0 0.0
      %294 = vmatpush.msra.mxu0 0.0
      %295 = vmatpush.msra.mxu0 0.0
      %296 = vmatpush.msra.mxu0 0.0
      %297 = vmatpush.msra.mxu0 0.0
      %298 = vmatpush.msra.mxu0 %v207
      %299 = vmatmul.f32.gmra.mxu0 %v219
      %v300 = vpop.f32.mrf.mxu0
      %v301 = vadd.f32 0.0, %v300
      %302 = vmatmul.f32.gmra.mxu0 %v222
      %v303 = vpop.f32.mrf.mxu0
      %v304 = vadd.f32 0.0, %v303
      %305 = vmatmul.f32.gmra.mxu0 %v225
      %v306 = vpop.f32.mrf.mxu0
      %v307 = vadd.f32 0.0, %v306
      %308 = vmatmul.f32.gmra.mxu0 %v228
      %v309 = vpop.f32.mrf.mxu0
      %v310 = vadd.f32 0.0, %v309
      %311 = vmatmul.f32.gmra.mxu0 %v231
      %v312 = vpop.f32.mrf.mxu0
      %v313 = vadd.f32 0.0, %v312
      %314 = vmatmul.f32.gmra.mxu0 %v234
      %v315 = vpop.f32.mrf.mxu0
      %v316 = vadd.f32 0.0, %v315
      %317 = vmatmul.f32.gmra.mxu0 %v237
      %v318 = vpop.f32.mrf.mxu0
      %v319 = vadd.f32 0.0, %v318
      %320 = vmatmul.f32.gmra.mxu0 %v240
      %v321 = vpop.f32.mrf.mxu0
      %v322 = vadd.f32 0.0, %v321
      %323 = vdwg.mxu0
      %324 = vmatpush.msra.mxu0 0.0
      %325 = vmatpush.msra.mxu0 0.0
      %326 = vmatpush.msra.mxu0 0.0
      %327 = vmatpush.msra.mxu0 0.0
      %328 = vmatpush.msra.mxu0 0.0
      %329 = vmatpush.msra.mxu0 0.0
      %330 = vmatpush.msra.mxu0 0.0
      %331 = vmatpush.msra.mxu0 0.0
      %332 = vmatpush.msra.mxu0 0.0
      %333 = vmatpush.msra.mxu0 0.0
      %334 = vmatpush.msra.mxu0 0.0
      %335 = vmatpush.msra.mxu0 0.0
      %336 = vmatpush.msra.mxu0 0.0
      %337 = vmatpush.msra.mxu0 0.0
      %338 = vmatpush.msra.mxu0 0.0
      %339 = vmatpush.msra.mxu0 %v208
      %340 = vmatmul.f32.gmra.mxu0 %v219
      %v341 = vpop.f32.mrf.mxu0
      %v342 = vadd.f32 0.0, %v341
      %343 = vmatmul.f32.gmra.mxu0 %v222
      %v344 = vpop.f32.mrf.mxu0
      %v345 = vadd.f32 0.0, %v344
      %346 = vmatmul.f32.gmra.mxu0 %v225
      %v347 = vpop.f32.mrf.mxu0
      %v348 = vadd.f32 0.0, %v347
      %349 = vmatmul.f32.gmra.mxu0 %v228
      %v350 = vpop.f32.mrf.mxu0
      %v351 = vadd.f32 0.0, %v350
      %352 = vmatmul.f32.gmra.mxu0 %v231
      %v353 = vpop.f32.mrf.mxu0
      %v354 = vadd.f32 0.0, %v353
      %355 = vmatmul.f32.gmra.mxu0 %v234
      %v356 = vpop.f32.mrf.mxu0
      %v357 = vadd.f32 0.0, %v356
      %358 = vmatmul.f32.gmra.mxu0 %v237
      %v359 = vpop.f32.mrf.mxu0
      %v360 = vadd.f32 0.0, %v359
      %361 = vmatmul.f32.gmra.mxu0 %v240
      %v362 = vpop.f32.mrf.mxu0
      %v363 = vadd.f32 0.0, %v362
      %364 = vdwg.mxu0
      %365 = vmatpush.msra.mxu0 0.0
      %366 = vmatpush.msra.mxu0 0.0
      %367 = vmatpush.msra.mxu0 0.0
      %368 = vmatpush.msra.mxu0 0.0
      %369 = vmatpush.msra.mxu0 0.0
      %370 = vmatpush.msra.mxu0 0.0
      %371 = vmatpush.msra.mxu0 0.0
      %372 = vmatpush.msra.mxu0 0.0
      %373 = vmatpush.msra.mxu0 0.0
      %374 = vmatpush.msra.mxu0 0.0
      %375 = vmatpush.msra.mxu0 0.0
      %376 = vmatpush.msra.mxu0 0.0
      %377 = vmatpush.msra.mxu0 0.0
      %378 = vmatpush.msra.mxu0 0.0
      %379 = vmatpush.msra.mxu0 0.0
      %380 = vmatpush.msra.mxu0 %v209
      %381 = vmatmul.f32.gmra.mxu0 %v219
      %v382 = vpop.f32.mrf.mxu0
      %v383 = vadd.f32 0.0, %v382
      %384 = vmatmul.f32.gmra.mxu0 %v222
      %v385 = vpop.f32.mrf.mxu0
      %v386 = vadd.f32 0.0, %v385
      %387 = vmatmul.f32.gmra.mxu0 %v225
      %v388 = vpop.f32.mrf.mxu0
      %v389 = vadd.f32 0.0, %v388
      %390 = vmatmul.f32.gmra.mxu0 %v228
      %v391 = vpop.f32.mrf.mxu0
      %v392 = vadd.f32 0.0, %v391
      %393 = vmatmul.f32.gmra.mxu0 %v231
      %v394 = vpop.f32.mrf.mxu0
      %v395 = vadd.f32 0.0, %v394
      %396 = vmatmul.f32.gmra.mxu0 %v234
      %v397 = vpop.f32.mrf.mxu0
      %v398 = vadd.f32 0.0, %v397
      %399 = vmatmul.f32.gmra.mxu0 %v237
      %v400 = vpop.f32.mrf.mxu0
      %v401 = vadd.f32 0.0, %v400
      %402 = vmatmul.f32.gmra.mxu0 %v240
      %v403 = vpop.f32.mrf.mxu0
      %v404 = vadd.f32 0.0, %v403
      %405 = vdwg.mxu0
      %406 = vmatpush.msra.mxu0 0.0
      %407 = vmatpush.msra.mxu0 0.0
      %408 = vmatpush.msra.mxu0 0.0
      %409 = vmatpush.msra.mxu0 0.0
      %410 = vmatpush.msra.mxu0 0.0
      %411 = vmatpush.msra.mxu0 0.0
      %412 = vmatpush.msra.mxu0 0.0
      %413 = vmatpush.msra.mxu0 0.0
      %414 = vmatpush.msra.mxu0 0.0
      %415 = vmatpush.msra.mxu0 0.0
      %416 = vmatpush.msra.mxu0 0.0
      %417 = vmatpush.msra.mxu0 0.0
      %418 = vmatpush.msra.mxu0 0.0
      %419 = vmatpush.msra.mxu0 0.0
      %420 = vmatpush.msra.mxu0 0.0
      %421 = vmatpush.msra.mxu0 %v210
      %422 = vmatmul.f32.gmra.mxu0 %v219
      %v423 = vpop.f32.mrf.mxu0
      %v424 = vadd.f32 0.0, %v423
      %425 = vmatmul.f32.gmra.mxu0 %v222
      %v426 = vpop.f32.mrf.mxu0
      %v427 = vadd.f32 0.0, %v426
      %428 = vmatmul.f32.gmra.mxu0 %v225
      %v429 = vpop.f32.mrf.mxu0
      %v430 = vadd.f32 0.0, %v429
      %431 = vmatmul.f32.gmra.mxu0 %v228
      %v432 = vpop.f32.mrf.mxu0
      %v433 = vadd.f32 0.0, %v432
      %434 = vmatmul.f32.gmra.mxu0 %v231
      %v435 = vpop.f32.mrf.mxu0
      %v436 = vadd.f32 0.0, %v435
      %437 = vmatmul.f32.gmra.mxu0 %v234
      %v438 = vpop.f32.mrf.mxu0
      %v439 = vadd.f32 0.0, %v438
      %440 = vmatmul.f32.gmra.mxu0 %v237
      %v441 = vpop.f32.mrf.mxu0
      %v442 = vadd.f32 0.0, %v441
      %443 = vmatmul.f32.gmra.mxu0 %v240
      %v444 = vpop.f32.mrf.mxu0
      %v445 = vadd.f32 0.0, %v444
      %446 = vdwg.mxu0
      %447 = vmatpush.msra.mxu0 0.0
      %448 = vmatpush.msra.mxu0 0.0
      %449 = vmatpush.msra.mxu0 0.0
      %450 = vmatpush.msra.mxu0 0.0
      %451 = vmatpush.msra.mxu0 0.0
      %452 = vmatpush.msra.mxu0 0.0
      %453 = vmatpush.msra.mxu0 0.0
      %454 = vmatpush.msra.mxu0 0.0
      %455 = vmatpush.msra.mxu0 0.0
      %456 = vmatpush.msra.mxu0 0.0
      %457 = vmatpush.msra.mxu0 0.0
      %458 = vmatpush.msra.mxu0 0.0
      %459 = vmatpush.msra.mxu0 0.0
      %460 = vmatpush.msra.mxu0 0.0
      %461 = vmatpush.msra.mxu0 0.0
      %462 = vmatpush.msra.mxu0 %v211
      %463 = vmatmul.f32.gmra.mxu0 %v219
      %v464 = vpop.f32.mrf.mxu0
      %v465 = vadd.f32 0.0, %v464
      %466 = vmatmul.f32.gmra.mxu0 %v222
      %v467 = vpop.f32.mrf.mxu0
      %v468 = vadd.f32 0.0, %v467
      %469 = vmatmul.f32.gmra.mxu0 %v225
      %v470 = vpop.f32.mrf.mxu0
      %v471 = vadd.f32 0.0, %v470
      %472 = vmatmul.f32.gmra.mxu0 %v228
      %v473 = vpop.f32.mrf.mxu0
      %v474 = vadd.f32 0.0, %v473
      %475 = vmatmul.f32.gmra.mxu0 %v231
      %v476 = vpop.f32.mrf.mxu0
      %v477 = vadd.f32 0.0, %v476
      %478 = vmatmul.f32.gmra.mxu0 %v234
      %v479 = vpop.f32.mrf.mxu0
      %v480 = vadd.f32 0.0, %v479
      %481 = vmatmul.f32.gmra.mxu0 %v237
      %v482 = vpop.f32.mrf.mxu0
      %v483 = vadd.f32 0.0, %v482
      %484 = vmatmul.f32.gmra.mxu0 %v240
      %v485 = vpop.f32.mrf.mxu0
      %v486 = vadd.f32 0.0, %v485
      %487 = vdwg.mxu0
      %488 = vmatpush.msra.mxu0 0.0
      %489 = vmatpush.msra.mxu0 0.0
      %490 = vmatpush.msra.mxu0 0.0
      %491 = vmatpush.msra.mxu0 0.0
      %492 = vmatpush.msra.mxu0 0.0
      %493 = vmatpush.msra.mxu0 0.0
      %494 = vmatpush.msra.mxu0 0.0
      %495 = vmatpush.msra.mxu0 0.0
      %496 = vmatpush.msra.mxu0 0.0
      %497 = vmatpush.msra.mxu0 0.0
      %498 = vmatpush.msra.mxu0 0.0
      %499 = vmatpush.msra.mxu0 0.0
      %500 = vmatpush.msra.mxu0 0.0
      %501 = vmatpush.msra.mxu0 0.0
      %502 = vmatpush.msra.mxu0 0.0
      %503 = vmatpush.msra.mxu0 %v212
      %504 = vmatmul.f32.gmra.mxu0 %v219
      %v505 = vpop.f32.mrf.mxu0
      %v506 = vadd.f32 0.0, %v505
      %507 = vmatmul.f32.gmra.mxu0 %v222
      %v508 = vpop.f32.mrf.mxu0
      %v509 = vadd.f32 0.0, %v508
      %510 = vmatmul.f32.gmra.mxu0 %v225
      %v511 = vpop.f32.mrf.mxu0
      %v512 = vadd.f32 0.0, %v511
      %513 = vmatmul.f32.gmra.mxu0 %v228
      %v514 = vpop.f32.mrf.mxu0
      %v515 = vadd.f32 0.0, %v514
      %516 = vmatmul.f32.gmra.mxu0 %v231
      %v517 = vpop.f32.mrf.mxu0
      %v518 = vadd.f32 0.0, %v517
      %519 = vmatmul.f32.gmra.mxu0 %v234
      %v520 = vpop.f32.mrf.mxu0
      %v521 = vadd.f32 0.0, %v520
      %522 = vmatmul.f32.gmra.mxu0 %v237
      %v523 = vpop.f32.mrf.mxu0
      %v524 = vadd.f32 0.0, %v523
      %525 = vmatmul.f32.gmra.mxu0 %v240
      %v526 = vpop.f32.mrf.mxu0
      %v527 = vadd.f32 0.0, %v526
      %528 = vdwg.mxu0
      %529 = vmatpush.msra.mxu0 0.0
      %530 = vmatpush.msra.mxu0 0.0
      %531 = vmatpush.msra.mxu0 0.0
      %532 = vmatpush.msra.mxu0 0.0
      %533 = vmatpush.msra.mxu0 0.0
      %534 = vmatpush.msra.mxu0 0.0
      %535 = vmatpush.msra.mxu0 0.0
      %536 = vmatpush.msra.mxu0 0.0
      %537 = vmatpush.msra.mxu0 0.0
      %538 = vmatpush.msra.mxu0 0.0
      %539 = vmatpush.msra.mxu0 0.0
      %540 = vmatpush.msra.mxu0 0.0
      %541 = vmatpush.msra.mxu0 0.0
      %542 = vmatpush.msra.mxu0 0.0
      %543 = vmatpush.msra.mxu0 0.0
      %544 = vmatpush.msra.mxu0 %v213
      %545 = vmatmul.f32.gmra.mxu0 %v219
      %v546 = vpop.f32.mrf.mxu0
      %v547 = vadd.f32 0.0, %v546
      %548 = vmatmul.f32.gmra.mxu0 %v222
      %v549 = vpop.f32.mrf.mxu0
      %v550 = vadd.f32 0.0, %v549
      %551 = vmatmul.f32.gmra.mxu0 %v225
      %v552 = vpop.f32.mrf.mxu0
      %v553 = vadd.f32 0.0, %v552
      %554 = vmatmul.f32.gmra.mxu0 %v228
      %v555 = vpop.f32.mrf.mxu0
      %v556 = vadd.f32 0.0, %v555
      %557 = vmatmul.f32.gmra.mxu0 %v231
      %v558 = vpop.f32.mrf.mxu0
      %v559 = vadd.f32 0.0, %v558
      %560 = vmatmul.f32.gmra.mxu0 %v234
      %v561 = vpop.f32.mrf.mxu0
      %v562 = vadd.f32 0.0, %v561
      %563 = vmatmul.f32.gmra.mxu0 %v237
      %v564 = vpop.f32.mrf.mxu0
      %v565 = vadd.f32 0.0, %v564
      %566 = vmatmul.f32.gmra.mxu0 %v240
      %v567 = vpop.f32.mrf.mxu0
      %v568 = vadd.f32 0.0, %v567
      %569 = vdwg.mxu0
      %570 = vmatpush.msra.mxu0 0.0
      %571 = vmatpush.msra.mxu0 0.0
      %572 = vmatpush.msra.mxu0 0.0
      %573 = vmatpush.msra.mxu0 0.0
      %574 = vmatpush.msra.mxu0 0.0
      %575 = vmatpush.msra.mxu0 0.0
      %576 = vmatpush.msra.mxu0 0.0
      %577 = vmatpush.msra.mxu0 0.0
      %578 = vmatpush.msra.mxu0 0.0
      %579 = vmatpush.msra.mxu0 0.0
      %580 = vmatpush.msra.mxu0 0.0
      %581 = vmatpush.msra.mxu0 0.0
      %582 = vmatpush.msra.mxu0 0.0
      %583 = vmatpush.msra.mxu0 0.0
      %584 = vmatpush.msra.mxu0 0.0
      %585 = vmatpush.msra.mxu0 %v214
      %586 = vmatmul.f32.gmra.mxu0 %v219
      %v587 = vpop.f32.mrf.mxu0
      %v588 = vadd.f32 0.0, %v587
      %589 = vmatmul.f32.gmra.mxu0 %v222
      %v590 = vpop.f32.mrf.mxu0
      %v591 = vadd.f32 0.0, %v590
      %592 = vmatmul.f32.gmra.mxu0 %v225
      %v593 = vpop.f32.mrf.mxu0
      %v594 = vadd.f32 0.0, %v593
      %595 = vmatmul.f32.gmra.mxu0 %v228
      %v596 = vpop.f32.mrf.mxu0
      %v597 = vadd.f32 0.0, %v596
      %598 = vmatmul.f32.gmra.mxu0 %v231
      %v599 = vpop.f32.mrf.mxu0
      %v600 = vadd.f32 0.0, %v599
      %601 = vmatmul.f32.gmra.mxu0 %v234
      %v602 = vpop.f32.mrf.mxu0
      %v603 = vadd.f32 0.0, %v602
      %604 = vmatmul.f32.gmra.mxu0 %v237
      %v605 = vpop.f32.mrf.mxu0
      %v606 = vadd.f32 0.0, %v605
      %607 = vmatmul.f32.gmra.mxu0 %v240
      %v608 = vpop.f32.mrf.mxu0
      %v609 = vadd.f32 0.0, %v608
      %610 = vdwg.mxu0
      %611 = vmatpush.msra.mxu0 0.0
      %612 = vmatpush.msra.mxu0 0.0
      %613 = vmatpush.msra.mxu0 0.0
      %614 = vmatpush.msra.mxu0 0.0
      %615 = vmatpush.msra.mxu0 0.0
      %616 = vmatpush.msra.mxu0 0.0
      %617 = vmatpush.msra.mxu0 0.0
      %618 = vmatpush.msra.mxu0 0.0
      %619 = vmatpush.msra.mxu0 0.0
      %620 = vmatpush.msra.mxu0 0.0
      %621 = vmatpush.msra.mxu0 0.0
      %622 = vmatpush.msra.mxu0 0.0
      %623 = vmatpush.msra.mxu0 0.0
      %624 = vmatpush.msra.mxu0 0.0
      %625 = vmatpush.msra.mxu0 0.0
      %626 = vmatpush.msra.mxu0 %v215
      %627 = vmatmul.f32.gmra.mxu0 %v219
      %v628 = vpop.f32.mrf.mxu0
      %v629 = vadd.f32 0.0, %v628
      %630 = vmatmul.f32.gmra.mxu0 %v222
      %v631 = vpop.f32.mrf.mxu0
      %v632 = vadd.f32 0.0, %v631
      %633 = vmatmul.f32.gmra.mxu0 %v225
      %v634 = vpop.f32.mrf.mxu0
      %v635 = vadd.f32 0.0, %v634
      %636 = vmatmul.f32.gmra.mxu0 %v228
      %v637 = vpop.f32.mrf.mxu0
      %v638 = vadd.f32 0.0, %v637
      %639 = vmatmul.f32.gmra.mxu0 %v231
      %v640 = vpop.f32.mrf.mxu0
      %v641 = vadd.f32 0.0, %v640
      %642 = vmatmul.f32.gmra.mxu0 %v234
      %v643 = vpop.f32.mrf.mxu0
      %v644 = vadd.f32 0.0, %v643
      %645 = vmatmul.f32.gmra.mxu0 %v237
      %v646 = vpop.f32.mrf.mxu0
      %v647 = vadd.f32 0.0, %v646
      %648 = vmatmul.f32.gmra.mxu0 %v240
      %v649 = vpop.f32.mrf.mxu0
      %v650 = vadd.f32 0.0, %v649
      %651 = vdwg.mxu0
      %652 = vmatpush.msra.mxu0 0.0
      %653 = vmatpush.msra.mxu0 0.0
      %654 = vmatpush.msra.mxu0 0.0
      %655 = vmatpush.msra.mxu0 0.0
      %656 = vmatpush.msra.mxu0 0.0
      %657 = vmatpush.msra.mxu0 0.0
      %658 = vmatpush.msra.mxu0 0.0
      %659 = vmatpush.msra.mxu0 0.0
      %660 = vmatpush.msra.mxu0 0.0
      %661 = vmatpush.msra.mxu0 0.0
      %662 = vmatpush.msra.mxu0 0.0
      %663 = vmatpush.msra.mxu0 0.0
      %664 = vmatpush.msra.mxu0 0.0
      %665 = vmatpush.msra.mxu0 0.0
      %666 = vmatpush.msra.mxu0 0.0
      %667 = vmatpush.msra.mxu0 %v216
      %668 = vmatmul.f32.gmra.mxu0 %v219
      %v669 = vpop.f32.mrf.mxu0
      %v670 = vadd.f32 0.0, %v669
      %671 = vmatmul.f32.gmra.mxu0 %v222
      %v672 = vpop.f32.mrf.mxu0
      %v673 = vadd.f32 0.0, %v672
      %674 = vmatmul.f32.gmra.mxu0 %v225
      %v675 = vpop.f32.mrf.mxu0
      %v676 = vadd.f32 0.0, %v675
      %677 = vmatmul.f32.gmra.mxu0 %v228
      %v678 = vpop.f32.mrf.mxu0
      %v679 = vadd.f32 0.0, %v678
      %680 = vmatmul.f32.gmra.mxu0 %v231
      %v681 = vpop.f32.mrf.mxu0
      %v682 = vadd.f32 0.0, %v681
      %683 = vmatmul.f32.gmra.mxu0 %v234
      %v684 = vpop.f32.mrf.mxu0
      %v685 = vadd.f32 0.0, %v684
      %686 = vmatmul.f32.gmra.mxu0 %v237
      %v687 = vpop.f32.mrf.mxu0
      %v688 = vadd.f32 0.0, %v687
      %689 = vmatmul.f32.gmra.mxu0 %v240
      %v690 = vpop.f32.mrf.mxu0
      %v691 = vadd.f32 0.0, %v690
      %692 = vdwg.mxu0
      %v693 = vld [vmem:[%s2] sm:$0xff]
      %v694 = vld [vmem:[%s2 + $0x8] sm:$0x7]
      %v697 = vperm.slane %v693, 0
      %v698 = vperm.slane %v693, 1
      %v699 = vperm.slane %v693, 2
      %v700 = vperm.slane %v693, 3
      %v701 = vperm.slane %v693, 4
      %v702 = vperm.slane %v693, 5
      %v703 = vperm.slane %v693, 6
      %v704 = vperm.slane %v693, 7
      %v705 = vperm.slane %v694, 0
      %v706 = vperm.slane %v694, 1
      %v707 = vperm.slane %v694, 2
      %v719 = vmul.f32 %v697, %v260
      %v720 = vmul.f32 %v698, %v301
      %v721 = vmul.f32 %v699, %v342
      %v722 = vmul.f32 %v700, %v383
      %v723 = vmul.f32 %v701, %v424
      %v724 = vmul.f32 %v702, %v465
      %v725 = vmul.f32 %v703, %v506
      %v726 = vmul.f32 %v704, %v547
      %v727 = vmul.f32 %v705, %v588
      %v728 = vmul.f32 %v706, %v629
      %v729 = vmul.f32 %v707, %v670
      %v730 = vmul.f32 %v697, %v263
      %v731 = vmul.f32 %v698, %v304
      %v732 = vmul.f32 %v699, %v345
      %v733 = vmul.f32 %v700, %v386
      %v734 = vmul.f32 %v701, %v427
      %v735 = vmul.f32 %v702, %v468
      %v736 = vmul.f32 %v703, %v509
      %v737 = vmul.f32 %v704, %v550
      %v738 = vmul.f32 %v705, %v591
      %v739 = vmul.f32 %v706, %v632
      %v740 = vmul.f32 %v707, %v673
      %s741 = scalar_lea.vmem %s2, 11
      %v742 = vld [vmem:[%s741] sm:$0xff]
      %v743 = vld [vmem:[%s741 + $0x8] sm:$0x7]
      %v746 = vperm.slane %v742, 0
      %v747 = vperm.slane %v742, 1
      %v748 = vperm.slane %v742, 2
      %v749 = vperm.slane %v742, 3
      %v750 = vperm.slane %v742, 4
      %v751 = vperm.slane %v742, 5
      %v752 = vperm.slane %v742, 6
      %v753 = vperm.slane %v742, 7
      %v754 = vperm.slane %v743, 0
      %v755 = vperm.slane %v743, 1
      %v756 = vperm.slane %v743, 2
      %v768 = vmul.f32 %v746, %v266
      %v769 = vmul.f32 %v747, %v307
      %v770 = vmul.f32 %v748, %v348
      %v771 = vmul.f32 %v749, %v389
      %v772 = vmul.f32 %v750, %v430
      %v773 = vmul.f32 %v751, %v471
      %v774 = vmul.f32 %v752, %v512
      %v775 = vmul.f32 %v753, %v553
      %v776 = vmul.f32 %v754, %v594
      %v777 = vmul.f32 %v755, %v635
      %v778 = vmul.f32 %v756, %v676
      %v779 = vmul.f32 %v746, %v269
      %v780 = vmul.f32 %v747, %v310
      %v781 = vmul.f32 %v748, %v351
      %v782 = vmul.f32 %v749, %v392
      %v783 = vmul.f32 %v750, %v433
      %v784 = vmul.f32 %v751, %v474
      %v785 = vmul.f32 %v752, %v515
      %v786 = vmul.f32 %v753, %v556
      %v787 = vmul.f32 %v754, %v597
      %v788 = vmul.f32 %v755, %v638
      %v789 = vmul.f32 %v756, %v679
      %v790 = vadd.f32 %v719, %v768
      %v791 = vadd.f32 %v720, %v769
      %v792 = vadd.f32 %v721, %v770
      %v793 = vadd.f32 %v722, %v771
      %v794 = vadd.f32 %v723, %v772
      %v795 = vadd.f32 %v724, %v773
      %v796 = vadd.f32 %v725, %v774
      %v797 = vadd.f32 %v726, %v775
      %v798 = vadd.f32 %v727, %v776
      %v799 = vadd.f32 %v728, %v777
      %v800 = vadd.f32 %v729, %v778
      %v801 = vadd.f32 %v730, %v779
      %v802 = vadd.f32 %v731, %v780
      %v803 = vadd.f32 %v732, %v781
      %v804 = vadd.f32 %v733, %v782
      %v805 = vadd.f32 %v734, %v783
      %v806 = vadd.f32 %v735, %v784
      %v807 = vadd.f32 %v736, %v785
      %v808 = vadd.f32 %v737, %v786
      %v809 = vadd.f32 %v738, %v787
      %v810 = vadd.f32 %v739, %v788
      %v811 = vadd.f32 %v740, %v789
      %s812 = scalar_lea.vmem %s2, 22
      %v813 = vld [vmem:[%s812] sm:$0xff]
      %v814 = vld [vmem:[%s812 + $0x8] sm:$0x7]
      %v817 = vperm.slane %v813, 0
      %v818 = vperm.slane %v813, 1
      %v819 = vperm.slane %v813, 2
      %v820 = vperm.slane %v813, 3
      %v821 = vperm.slane %v813, 4
      %v822 = vperm.slane %v813, 5
      %v823 = vperm.slane %v813, 6
      %v824 = vperm.slane %v813, 7
      %v825 = vperm.slane %v814, 0
      %v826 = vperm.slane %v814, 1
      %v827 = vperm.slane %v814, 2
      %v839 = vmul.f32 %v817, %v272
      %v840 = vmul.f32 %v818, %v313
      %v841 = vmul.f32 %v819, %v354
      %v842 = vmul.f32 %v820, %v395
      %v843 = vmul.f32 %v821, %v436
      %v844 = vmul.f32 %v822, %v477
      %v845 = vmul.f32 %v823, %v518
      %v846 = vmul.f32 %v824, %v559
      %v847 = vmul.f32 %v825, %v600
      %v848 = vmul.f32 %v826, %v641
      %v849 = vmul.f32 %v827, %v682
      %v850 = vmul.f32 %v817, %v275
      %v851 = vmul.f32 %v818, %v316
      %v852 = vmul.f32 %v819, %v357
      %v853 = vmul.f32 %v820, %v398
      %v854 = vmul.f32 %v821, %v439
      %v855 = vmul.f32 %v822, %v480
      %v856 = vmul.f32 %v823, %v521
      %v857 = vmul.f32 %v824, %v562
      %v858 = vmul.f32 %v825, %v603
      %v859 = vmul.f32 %v826, %v644
      %v860 = vmul.f32 %v827, %v685
      %v861 = vadd.f32 %v790, %v839
      %v862 = vadd.f32 %v791, %v840
      %v863 = vadd.f32 %v792, %v841
      %v864 = vadd.f32 %v793, %v842
      %v865 = vadd.f32 %v794, %v843
      %v866 = vadd.f32 %v795, %v844
      %v867 = vadd.f32 %v796, %v845
      %v868 = vadd.f32 %v797, %v846
      %v869 = vadd.f32 %v798, %v847
      %v870 = vadd.f32 %v799, %v848
      %v871 = vadd.f32 %v800, %v849
      %v872 = vadd.f32 %v801, %v850
      %v873 = vadd.f32 %v802, %v851
      %v874 = vadd.f32 %v803, %v852
      %v875 = vadd.f32 %v804, %v853
      %v876 = vadd.f32 %v805, %v854
      %v877 = vadd.f32 %v806, %v855
      %v878 = vadd.f32 %v807, %v856
      %v879 = vadd.f32 %v808, %v857
      %v880 = vadd.f32 %v809, %v858
      %v881 = vadd.f32 %v810, %v859
      %v882 = vadd.f32 %v811, %v860
      %s883 = scalar_lea.vmem %s2, 33
      %v884 = vld [vmem:[%s883] sm:$0xff]
      %v885 = vld [vmem:[%s883 + $0x8] sm:$0x7]
      %v888 = vperm.slane %v884, 0
      %v889 = vperm.slane %v884, 1
      %v890 = vperm.slane %v884, 2
      %v891 = vperm.slane %v884, 3
      %v892 = vperm.slane %v884, 4
      %v893 = vperm.slane %v884, 5
      %v894 = vperm.slane %v884, 6
      %v895 = vperm.slane %v884, 7
      %v896 = vperm.slane %v885, 0
      %v897 = vperm.slane %v885, 1
      %v898 = vperm.slane %v885, 2
      %v910 = vmul.f32 %v888, %v278
      %v911 = vmul.f32 %v889, %v319
      %v912 = vmul.f32 %v890, %v360
      %v913 = vmul.f32 %v891, %v401
      %v914 = vmul.f32 %v892, %v442
      %v915 = vmul.f32 %v893, %v483
      %v916 = vmul.f32 %v894, %v524
      %v917 = vmul.f32 %v895, %v565
      %v918 = vmul.f32 %v896, %v606
      %v919 = vmul.f32 %v897, %v647
      %v920 = vmul.f32 %v898, %v688
      %v921 = vmul.f32 %v888, %v281
      %v922 = vmul.f32 %v889, %v322
      %v923 = vmul.f32 %v890, %v363
      %v924 = vmul.f32 %v891, %v404
      %v925 = vmul.f32 %v892, %v445
      %v926 = vmul.f32 %v893, %v486
      %v927 = vmul.f32 %v894, %v527
      %v928 = vmul.f32 %v895, %v568
      %v929 = vmul.f32 %v896, %v609
      %v930 = vmul.f32 %v897, %v650
      %v931 = vmul.f32 %v898, %v691
      %v932 = vadd.f32 %v861, %v910
      %v933 = vadd.f32 %v862, %v911
      %v934 = vadd.f32 %v863, %v912
      %v935 = vadd.f32 %v864, %v913
      %v936 = vadd.f32 %v865, %v914
      %v937 = vadd.f32 %v866, %v915
      %v938 = vadd.f32 %v867, %v916
      %v939 = vadd.f32 %v868, %v917
      %v940 = vadd.f32 %v869, %v918
      %v941 = vadd.f32 %v870, %v919
      %v942 = vadd.f32 %v871, %v920
      %v943 = vadd.f32 %v872, %v921
      %v944 = vadd.f32 %v873, %v922
      %v945 = vadd.f32 %v874, %v923
      %v946 = vadd.f32 %v875, %v924
      %v947 = vadd.f32 %v876, %v925
      %v948 = vadd.f32 %v877, %v926
      %v949 = vadd.f32 %v878, %v927
      %v950 = vadd.f32 %v879, %v928
      %v951 = vadd.f32 %v880, %v929
      %v952 = vadd.f32 %v881, %v930
      %v953 = vadd.f32 %v882, %v931
      %v954 = vld [vmem:[%s3] sm:$0xff]
      %v955 = vld [vmem:[%s3 + $0x8] sm:$0xff]
      %957 = vset.pattern.permute.xlu0 0
      %958 = vperm.xlu0 %957, %v954
      %v959 = vpop.permute.xlu0 %958
      %962 = vset.pattern.permute.xlu0 0
      %963 = vperm.xlu0 %962, %v955
      %v964 = vpop.permute.xlu0 %963
      %v966 = vadd.f32 %v932, %v959
      %v967 = vadd.f32 %v933, %v959
      %v968 = vadd.f32 %v934, %v959
      %v969 = vadd.f32 %v935, %v959
      %v970 = vadd.f32 %v936, %v959
      %v971 = vadd.f32 %v937, %v959
      %v972 = vadd.f32 %v938, %v959
      %v973 = vadd.f32 %v939, %v959
      %v974 = vadd.f32 %v940, %v959
      %v975 = vadd.f32 %v941, %v959
      %v976 = vadd.f32 %v942, %v959
      %v977 = vadd.f32 %v943, %v964
      %v978 = vadd.f32 %v944, %v964
      %v979 = vadd.f32 %v945, %v964
      %v980 = vadd.f32 %v946, %v964
      %v981 = vadd.f32 %v947, %v964
      %v982 = vadd.f32 %v948, %v964
      %v983 = vadd.f32 %v949, %v964
      %v984 = vadd.f32 %v950, %v964
      %v985 = vadd.f32 %v951, %v964
      %v986 = vadd.f32 %v952, %v964
      %v987 = vadd.f32 %v953, %v964
      %vm988 = vcmp.gt.f32.partialorder %v966, 0.0
      %vm989 = vcmp.gt.f32.partialorder %v967, 0.0
      %vm990 = vcmp.gt.f32.partialorder %v968, 0.0
      %vm991 = vcmp.gt.f32.partialorder %v969, 0.0
      %vm992 = vcmp.gt.f32.partialorder %v970, 0.0
      %vm993 = vcmp.gt.f32.partialorder %v971, 0.0
      %vm994 = vcmp.gt.f32.partialorder %v972, 0.0
      %vm995 = vcmp.gt.f32.partialorder %v973, 0.0
      %vm996 = vcmp.gt.f32.partialorder %v974, 0.0
      %vm997 = vcmp.gt.f32.partialorder %v975, 0.0
      %vm998 = vcmp.gt.f32.partialorder %v976, 0.0
      %vm999 = vcmp.gt.f32.partialorder %v977, 0.0
      %vm1000 = vcmp.gt.f32.partialorder %v978, 0.0
      %vm1001 = vcmp.gt.f32.partialorder %v979, 0.0
      %vm1002 = vcmp.gt.f32.partialorder %v980, 0.0
      %vm1003 = vcmp.gt.f32.partialorder %v981, 0.0
      %vm1004 = vcmp.gt.f32.partialorder %v982, 0.0
      %vm1005 = vcmp.gt.f32.partialorder %v983, 0.0
      %vm1006 = vcmp.gt.f32.partialorder %v984, 0.0
      %vm1007 = vcmp.gt.f32.partialorder %v985, 0.0
      %vm1008 = vcmp.gt.f32.partialorder %v986, 0.0
      %vm1009 = vcmp.gt.f32.partialorder %v987, 0.0
      %v1010 = vmul.f32 %v966, 1.202
      %v1011 = vmul.f32 %v967, 1.202
      %v1012 = vmul.f32 %v968, 1.202
      %v1013 = vmul.f32 %v969, 1.202
      %v1014 = vmul.f32 %v970, 1.202
      %v1015 = vmul.f32 %v971, 1.202
      %v1016 = vmul.f32 %v972, 1.202
      %v1017 = vmul.f32 %v973, 1.202
      %v1018 = vmul.f32 %v974, 1.202
      %v1019 = vmul.f32 %v975, 1.202
      %v1020 = vmul.f32 %v976, 1.202
      %v1021 = vmul.f32 %v977, 1.202
      %v1022 = vmul.f32 %v978, 1.202
      %v1023 = vmul.f32 %v979, 1.202
      %v1024 = vmul.f32 %v980, 1.202
      %v1025 = vmul.f32 %v981, 1.202
      %v1026 = vmul.f32 %v982, 1.202
      %v1027 = vmul.f32 %v983, 1.202
      %v1028 = vmul.f32 %v984, 1.202
      %v1029 = vmul.f32 %v985, 1.202
      %v1030 = vmul.f32 %v986, 1.202
      %v1031 = vmul.f32 %v987, 1.202
      %v1032 = vsel %vm988, %v966, %v1010
      %v1033 = vsel %vm989, %v967, %v1011
      %v1034 = vsel %vm990, %v968, %v1012
      %v1035 = vsel %vm991, %v969, %v1013
      %v1036 = vsel %vm992, %v970, %v1014
      %v1037 = vsel %vm993, %v971, %v1015
      %v1038 = vsel %vm994, %v972, %v1016
      %v1039 = vsel %vm995, %v973, %v1017
      %v1040 = vsel %vm996, %v974, %v1018
      %v1041 = vsel %vm997, %v975, %v1019
      %v1042 = vsel %vm998, %v976, %v1020
      %v1043 = vsel %vm999, %v977, %v1021
      %v1044 = vsel %vm1000, %v978, %v1022
      %v1045 = vsel %vm1001, %v979, %v1023
      %v1046 = vsel %vm1002, %v980, %v1024
      %v1047 = vsel %vm1003, %v981, %v1025
      %v1048 = vsel %vm1004, %v982, %v1026
      %v1049 = vsel %vm1005, %v983, %v1027
      %v1050 = vsel %vm1006, %v984, %v1028
      %v1051 = vsel %vm1007, %v985, %v1029
      %v1052 = vsel %vm1008, %v986, %v1030
      %v1053 = vsel %vm1009, %v987, %v1031
      %1054 = vst [vmem:[%s197] sm:$0xff] %v1032
      %1055 = vst [vmem:[%s197 + $0x8] sm:$0xff] %v1033
      %1056 = vst [vmem:[%s197 + $0x10] sm:$0xff] %v1034
      %1057 = vst [vmem:[%s197 + $0x18] sm:$0xff] %v1035
      %1058 = vst [vmem:[%s197 + $0x20] sm:$0xff] %v1036
      %1059 = vst [vmem:[%s197 + $0x28] sm:$0xff] %v1037
      %1060 = vst [vmem:[%s197 + $0x30] sm:$0xff] %v1038
      %1061 = vst [vmem:[%s197 + $0x38] sm:$0xff] %v1039
      %1062 = vst [vmem:[%s197 + $0x40] sm:$0xff] %v1040
      %1063 = vst [vmem:[%s197 + $0x48] sm:$0xff] %v1041
      %vm1064 = vcmask 728064
      %1065 = vst.msk [vmem:[%s197 + $0x50] sm:$0xff] %vm1064, %v1042
      %1066 = vst [vmem:[%s197 + $0x58] sm:$0xff] %v1043
      %1067 = vst [vmem:[%s197 + $0x60] sm:$0xff] %v1044
      %1068 = vst [vmem:[%s197 + $0x68] sm:$0xff] %v1045
      %1069 = vst [vmem:[%s197 + $0x70] sm:$0xff] %v1046
      %1070 = vst [vmem:[%s197 + $0x78] sm:$0xff] %v1047
      %1071 = vst [vmem:[%s197 + $0x80] sm:$0xff] %v1048
      %1072 = vst [vmem:[%s197 + $0x88] sm:$0xff] %v1049
      %1073 = vst [vmem:[%s197 + $0x90] sm:$0xff] %v1050
      %1074 = vst [vmem:[%s197 + $0x98] sm:$0xff] %v1051
      %1075 = vst [vmem:[%s197 + $0xa0] sm:$0xff] %v1052
      %1076 = vst.msk [vmem:[%s197 + $0xa8] sm:$0xff] %vm1064, %v1053
      %p1077 = scmp.lt.s32.totalorder %s15, 1
      %s1078 = scalar_select %p1077, %s15, 1
      %s1079 = smul.addr %s1078, 22
      %s1080 = smul.addr %s1079, 8
      %s1081 = scalar_lea.vmem %s4, %s1080
      // Predicated region
      $region37: #{conv_transpose_leaky.1} parent=35 // pred_check
        %p1082 = pneg %p122
      $region38: #{conv_transpose_leaky.1} parent=35 // pred_check_branch
        %1084 = sbr.rel (%p1082) target = $region40
      $region39: #{conv_transpose_leaky.1} parent=35 // pred_region
        _
      $region40: #{conv_transpose_leaky.1} parent=35 // pred_fallthru
        _
    $region36: #{conv_transpose_leaky.1} parent=5 // pred_fallthru
      _
    %p1085 = scmp.le.s32.totalorder 2, %s10
    // Predicated region
    $region41: #{conv_transpose_leaky.1} parent=5 // pred_check
      %p1086 = pneg %p1085
    $region42: #{conv_transpose_leaky.1} parent=5 // pred_check_branch
      %1088 = sbr.rel (%p1086) target = $region44
    $region43: #{conv_transpose_leaky.1} parent=5 // pred_region
      %s1089 = ssub.s32 %s10, 2
      // Predicated region
      $region45: #{conv_transpose_leaky.1} parent=43 // pred_check
        %p1090 = pneg %p128
      $region46: #{conv_transpose_leaky.1} parent=43 // pred_check_branch
        %1092 = sbr.rel (%p1090) target = $region48
      $region47: #{conv_transpose_leaky.1} parent=43 // pred_region
        %p1093 = scmp.lt.s32.totalorder %s16, 1
        %s1094 = scalar_select %p1093, %s16, 1
        %s1095 = smul.addr %s1094, 22
        %s1096 = smul.addr %s1095, 8
        %s1097 = scalar_lea.vmem %s4, %s1096
      $region48: #{conv_transpose_leaky.1} parent=43 // pred_fallthru
        _
    $region44: #{conv_transpose_leaky.1} parent=5 // pred_fallthru
      _
  $region6: #{conv_transpose_leaky.1} parent=0 // loop_footer
    %s14 = sadd.s32 1, %s10
  $region7: #{conv_transpose_leaky.1} parent=0 // loop_footer_branch
    %9 = sbr.rel target = $region3
  $region8: #{conv_transpose_leaky.1} parent=0 // loop_exit
    _

</llo_original>
